<compile_context>
chip_gen: v5e
topology: v5e:2x2
jax: 0.10.0
libtpu: 0.0.40
codegen_flags: <defaults>
</compile_context>

<pallas_src>
import jax
import jax.numpy as jnp
from jax.experimental import pallas as pl
from jax.experimental.pallas import tpu as pltpu

_LANE = 128        # TPU lane width (last vreg dim)
_MAX_TILE = 32768  # batch lanes per grid step (amortizes ~0.35us step cost)


def _linear_kernel(x_ref, w_ref, b_ref, o_ref):
    # x_ref: [in_f, TB]  (VMEM, batch on lanes)
    # w_ref: [in_f]      (SMEM float32 scalars)
    # b_ref: [1]         (SMEM float32 scalar)
    # o_ref: [1, TB]     (VMEM, lane-dense output)
    in_f = x_ref.shape[0]
    acc = x_ref[0:1, :].astype(jnp.float32) * w_ref[0]
    for i in range(1, in_f):              # static unroll (in_f == 3)
        acc = acc + x_ref[i:i + 1, :].astype(jnp.float32) * w_ref[i]
    o_ref[...] = (acc + b_ref[0]).astype(o_ref.dtype)


def multivariate_linear_regression(x, weight, bias):
    """Equivalent of nn.Linear(3, 1): x @ W.T + b.

    x: [B, 3]; weight: [1, 3]; bias: [1]  ->  [B, 1].
    """
    B, in_f = x.shape
    out_f = weight.shape[0]            # == 1 for this module

    # --- tile / grid choice -------------------------------------------------
    b_lane = pl.cdiv(B, _LANE) * _LANE
    # Target >=4 grid steps for non-tiny batches (keeps both v7x TCs busy and
    # lets the pipeline overlap DMA with compute); cap at the 32K-lane sweet
    # spot; tiny batches run as a single step.
    target_steps = 4 if b_lane >= 4 * _LANE else 1
    tb = min(_MAX_TILE,
             max(_LANE, pl.cdiv(b_lane // target_steps, _LANE) * _LANE))
    b_pad = pl.cdiv(B, tb) * tb
    grid = b_pad // tb

    # --- operand layout -----------------------------------------------------
    # Feature-major, lane-dense x.  Skip the pad when B is already aligned.
    if b_pad == B:
        x_t = x.T                                          # [in_f, b_pad]
    else:
        x_t = jnp.pad(x, ((0, b_pad - B), (0, 0))).T       # [in_f, b_pad]

    w_flat = weight.reshape(in_f).astype(jnp.float32)      # [in_f] -> SMEM
    b_flat = bias.reshape(out_f).astype(jnp.float32)       # [1]    -> SMEM

    itemsize = jnp.dtype(x.dtype).itemsize
    out_t = pl.pallas_call(
        _linear_kernel,
        out_shape=jax.ShapeDtypeStruct((1, b_pad), x.dtype),
        grid=(grid,),
        in_specs=[
            pl.BlockSpec((in_f, tb), lambda i: (0, i)),          # x tile (VMEM)
            pl.BlockSpec(memory_space=pltpu.MemorySpace.SMEM),   # weight
            pl.BlockSpec(memory_space=pltpu.MemorySpace.SMEM),   # bias
        ],
        out_specs=pl.BlockSpec((1, tb), lambda i: (0, i)),
        compiler_params=pltpu.CompilerParams(
            dimension_semantics=("parallel",),
            # Let XLA fuse the pad/transpose producer into the x operand DMA.
            allow_input_fusion=[True, False, False],
        ),
        cost_estimate=pl.CostEstimate(
            flops=2 * b_pad * in_f,
            transcendentals=0,
            bytes_accessed=(in_f * b_pad + b_pad) * itemsize + (in_f + 1) * 4),
    )(x_t, w_flat, b_flat)

    # Back to the PyTorch layout [B, out_f=1]; avoid the slice copy when
    # no padding was added.
    if b_pad == B:
        return out_t.reshape(B, out_f)
    return out_t[0, :B].reshape(B, out_f)


if __name__ == "__main__":
    key = jax.random.PRNGKey(0)
    kx, kw, kb = jax.random.split(key, 3)

    # Deterministic inputs matching nn.Linear(3, 1) shapes.
    batch = 8
    x = jax.random.normal(kx, (batch, 3), dtype=jnp.float32)
    weight = jax.random.uniform(kw, (1, 3), dtype=jnp.float32,
                                minval=-1.0, maxval=1.0)
    bias = jax.random.uniform(kb, (1,), dtype=jnp.float32,
                              minval=-1.0, maxval=1.0)

    out = multivariate_linear_regression(x, weight, bias)
    out = jax.block_until_ready(out)
    ref = x @ weight.T + bias
    assert out.shape == (batch, 1)
    assert jnp.allclose(out, ref, atol=1e-5, rtol=1e-5)

    # Also exercise the aligned, multi-step grid path (grid = 4, no pad/slice).
    batch2 = 512
    x2 = jax.random.normal(kx, (batch2, 3), dtype=jnp.float32)
    out2 = jax.block_until_ready(
        multivariate_linear_regression(x2, weight, bias))
    ref2 = x2 @ weight.T + bias
    assert out2.shape == (batch2, 1)
    assert jnp.allclose(out2, ref2, atol=1e-5, rtol=1e-5)

    print("KERNEL_OK")
</pallas_src>

<mosaic_0001>
module attributes {stable_mosaic.version = 11 : i64} {
  func.func @_linear_kernel(%arg0: i32, %arg1: memref<3x128xf32, #tpu.memory_space<vmem>>, %arg2: memref<3xf32, #tpu.memory_space<smem>>, %arg3: memref<1xf32, #tpu.memory_space<smem>>, %arg4: memref<1x128xf32, #tpu.memory_space<vmem>>) attributes {dimension_semantics = [#tpu.dimension_semantics<parallel>], iteration_bounds = array<i64: 1>, scalar_prefetch = 0 : i64, scratch_operands = 0 : i64, tpu.core_type = #tpu.core_type<tc>, window_params = [{transform_indices = @transform_0, window_bounds = array<i64: 3, 128>}, {transform_indices = @transform_1, window_bounds = array<i64: 3>}, {transform_indices = @transform_2, window_bounds = array<i64: 1>}, {transform_indices = @transform_3, window_bounds = array<i64: 1, 128>}]} {
    %c0 = arith.constant 0 : index
    %c0_0 = arith.constant 0 : index
    %0 = vector.load %arg1[%c0, %c0_0] : memref<3x128xf32, #tpu.memory_space<vmem>>, vector<1x128xf32>
    %c0_1 = arith.constant 0 : index
    %1 = memref.load %arg2[%c0_1] : memref<3xf32, #tpu.memory_space<smem>>
    %2 = vector.broadcast %1 : f32 to vector<1x128xf32>
    %3 = arith.mulf %0, %2 : vector<1x128xf32>
    %c1 = arith.constant 1 : index
    %c0_2 = arith.constant 0 : index
    %4 = vector.load %arg1[%c1, %c0_2] : memref<3x128xf32, #tpu.memory_space<vmem>>, vector<1x128xf32>
    %c1_3 = arith.constant 1 : index
    %5 = memref.load %arg2[%c1_3] : memref<3xf32, #tpu.memory_space<smem>>
    %6 = vector.broadcast %5 : f32 to vector<1x128xf32>
    %7 = arith.mulf %4, %6 : vector<1x128xf32>
    %8 = arith.addf %3, %7 : vector<1x128xf32>
    %c2 = arith.constant 2 : index
    %c0_4 = arith.constant 0 : index
    %9 = vector.load %arg1[%c2, %c0_4] : memref<3x128xf32, #tpu.memory_space<vmem>>, vector<1x128xf32>
    %c2_5 = arith.constant 2 : index
    %10 = memref.load %arg2[%c2_5] : memref<3xf32, #tpu.memory_space<smem>>
    %11 = vector.broadcast %10 : f32 to vector<1x128xf32>
    %12 = arith.mulf %9, %11 : vector<1x128xf32>
    %13 = arith.addf %8, %12 : vector<1x128xf32>
    %c0_6 = arith.constant 0 : index
    %14 = memref.load %arg3[%c0_6] : memref<1xf32, #tpu.memory_space<smem>>
    %15 = vector.broadcast %14 : f32 to vector<1x128xf32>
    %16 = arith.addf %13, %15 : vector<1x128xf32>
    %c0_7 = arith.constant 0 : index
    %c0_8 = arith.constant 0 : index
    %17 = vector.load %arg4[%c0_7, %c0_8] : memref<1x128xf32, #tpu.memory_space<vmem>>, vector<1x128xf32>
    tpu.vector_store %arg4[%c0_7, %c0_8], %16 {strides = array<i32>} : memref<1x128xf32, #tpu.memory_space<vmem>>, vector<1x128xf32>,
    return
  }
  func.func @transform_0(%arg0: i32) -> (i32, i32) {
    %c0_i32 = arith.constant 0 : i32
    %c0_i32_0 = arith.constant 0 : i32
    return %c0_i32, %arg0 : i32, i32
  }
  func.func @transform_1(%arg0: i32) -> i32 {
    %c0_i32 = arith.constant 0 : i32
    %c0_i32_0 = arith.constant 0 : i32
    return %c0_i32 : i32
  }
  func.func @transform_2(%arg0: i32) -> i32 {
    %c0_i32 = arith.constant 0 : i32
    %c0_i32_0 = arith.constant 0 : i32
    return %c0_i32 : i32
  }
  func.func @transform_3(%arg0: i32) -> (i32, i32) {
    %c0_i32 = arith.constant 0 : i32
    %c0_i32_0 = arith.constant 0 : i32
    return %c0_i32, %arg0 : i32, i32
  }
}

</mosaic_0001>

<llo_original>
// kernel: tpu_custom_call.1
$region0: #{tpu_custom_call.1}
  #allocation0 [shape = 'u32[]', space=smem, size = 0x4, offset = 0x4, fixed_abs, tag = 'smem constant byte address 0x4 - core index']
  #allocation1 [shape = 'u32[72,128]{1,0:T(1,128)}', space=vmem, size = 0x9000, scoped, tag = 'internal scratch']
  #allocation2 [shape = 'f32[1]{0:T(128)S(6)}', space=smem, size = 0x200, scoped, tag = 'scoped memory for tpu_custom_call.1']
  %s0 = inlined_call_operand.hbm [shape: f32[3,128], index: 0, kind: input, shape index: {}]
  %s1 = inlined_call_operand.vmem [shape: f32[3], index: 1, kind: input, shape index: {}]
  %s2 = inlined_call_operand.<no memory space> [shape: f32[1], index: 2, kind: input, shape index: {}]
  %s3 = inlined_call_operand.hbm [shape: f32[1,128], index: 3, kind: output, shape index: {}]
  %s4 = sld [smem:[#allocation0]]
  $region30: #{tpu_custom_call.1} parent=0
    _
  %s6 = ssub.s32 1, %s4
  %s7 = scalar_select 0, %s6, %s4
  %8 = sst [smem:[#allocation2]] %s2
  $region1: #{tpu_custom_call.1} parent=0
    #allocation3 [shape = 'u8[2048]{0}', space=vmem, size = 0x800, scoped, tag = 'input window, operand 0, single buffered']
    #allocation4 [shape = 's32[1]{0}', space=sflag, size = 0x4, scoped, tag = 'scoped memory for tpu_custom_call.1']
    #allocation5 [shape = 's32[1]{0}', space=sflag, size = 0x4, scoped, tag = 'scoped memory for tpu_custom_call.1']
    #allocation6 [shape = 's32[1]{0}', space=sflag, size = 0x4, scoped, tag = 'scoped memory for tpu_custom_call.1']
    #allocation7 [shape = 'u8[512]{0}', space=smem, size = 0x200, scoped, tag = 'input window, operand 1, single buffered']
    #allocation8 [shape = 'u8[512]{0}', space=vmem, size = 0x400, scoped, tag = 'output window, operand 0, single buffered']
    %9 = vsyncpa [#allocation4], 0
    %10 = vsyncpa [#allocation6], 0
    %11 = vsyncpa [#allocation5], 0
    // Predicated region
    $region2: #{tpu_custom_call.1} parent=1 // pred_check
      _
    $region3: #{tpu_custom_call.1} parent=1 // pred_check_branch
      %13 = sbr.rel (0) target = $region5
    $region4: #{tpu_custom_call.1} parent=1 // pred_region
      %15 = vsyncadd [#allocation4], 0
      %s17 = sshll.u32 %s0, 4
      %s18 = int_to_ptr.hbm [resolvable:$true] %s17
      %s19 = sshll.u32 [#allocation3], 4
      %s20 = int_to_ptr.vmem [resolvable:$true] %s19
      %22 = dma.hbm_to_vmem [thread:$0]  %s18, 64, %s20, [#allocation4]
    $region5: #{tpu_custom_call.1} parent=1 // pred_fallthru
      _
    // Predicated region
    $region6: #{tpu_custom_call.1} parent=1 // pred_check
      _
    $region7: #{tpu_custom_call.1} parent=1 // pred_check_branch
      %24 = sbr.rel (0) target = $region9
    $region8: #{tpu_custom_call.1} parent=1 // pred_region
      %26 = vsyncadd [#allocation6], 0
      %s28 = sshll.u32 %s1, 4
      %s29 = int_to_ptr.vmem [resolvable:$true] %s28
      %31 = dma.vmem_to_smem %s29, 16, [#allocation7], [#allocation6]
    $region9: #{tpu_custom_call.1} parent=1 // pred_fallthru
      _
    // Predicated region
    $region10: #{tpu_custom_call.1} parent=1 // pred_check
      _
    $region11: #{tpu_custom_call.1} parent=1 // pred_check_branch
      %33 = sbr.rel (0) target = $region13
    $region12: #{tpu_custom_call.1} parent=1 // pred_region
      _
    $region13: #{tpu_custom_call.1} parent=1 // pred_fallthru
      _
    // Predicated region
    $region14: #{tpu_custom_call.1} parent=1 // pred_check
      _
    $region15: #{tpu_custom_call.1} parent=1 // pred_check_branch
      %35 = sbr.rel (0) target = $region17
    $region16: #{tpu_custom_call.1} parent=1 // pred_region
      %37 = dma.done [#allocation4], 64
    $region17: #{tpu_custom_call.1} parent=1 // pred_fallthru
      _
    // Predicated region
    $region18: #{tpu_custom_call.1} parent=1 // pred_check
      _
    $region19: #{tpu_custom_call.1} parent=1 // pred_check_branch
      %39 = sbr.rel (0) target = $region21
    $region20: #{tpu_custom_call.1} parent=1 // pred_region
      %41 = dma.done [#allocation6], 16
    $region21: #{tpu_custom_call.1} parent=1 // pred_fallthru
      _
    %42 = sfence
    %v43 = vld [vmem:[#allocation3] sm:$0x1]
    %s44 = sld [smem:[#allocation7]]
    %v45 = vstv %s44
    %v46 = vmul.f32 %v43, %v45
    %v47 = vld [vmem:[#allocation3 + $0x1] sm:$0x1]
    %s48 = sld [smem:[#allocation7 + $0x1]]
    %v49 = vstv %s48
    %v50 = vmul.f32 %v47, %v49
    %v51 = vadd.f32 %v46, %v50
    %v52 = vld [vmem:[#allocation3 + $0x2] sm:$0x1]
    %s53 = sld [smem:[#allocation7 + $0x2]]
    %v54 = vstv %s53
    %v55 = vmul.f32 %v52, %v54
    %v56 = vadd.f32 %v51, %v55
    %s57 = sld [smem:[#allocation2]]
    %v58 = vstv %s57
    %v59 = vadd.f32 %v56, %v58
    %60 = vst [vmem:[#allocation8] sm:$0x1] %v59
    // Predicated region
    $region22: #{tpu_custom_call.1} parent=1 // pred_check
      _
    $region23: #{tpu_custom_call.1} parent=1 // pred_check_branch
      %62 = sbr.rel (0) target = $region25
    $region24: #{tpu_custom_call.1} parent=1 // pred_region
      %64 = vsyncadd [#allocation5], 0
      %s66 = sshll.u32 [#allocation8], 4
      %s67 = int_to_ptr.vmem [resolvable:$true] %s66
      %s68 = sshll.u32 %s3, 4
      %s69 = int_to_ptr.hbm [resolvable:$true] %s68
      %71 = dma.vmem_to_hbm [thread:$0]  %s67, 16, %s69, [#allocation5]
    $region25: #{tpu_custom_call.1} parent=1 // pred_fallthru
      _
    // Predicated region
    $region26: #{tpu_custom_call.1} parent=1 // pred_check
      _
    $region27: #{tpu_custom_call.1} parent=1 // pred_check_branch
      %73 = sbr.rel (0) target = $region29
    $region28: #{tpu_custom_call.1} parent=1 // pred_region
      %75 = dma.done [#allocation5], 16
    $region29: #{tpu_custom_call.1} parent=1 // pred_fallthru
      _
    %76 = vsyncpa [#allocation4], 1
    %77 = vsyncpa [#allocation5], 1
    %78 = vsyncpa [#allocation6], 1

</llo_original>
